<compile_context>
chip_gen: v7x
topology: tpu7x:2x2x1
jax: 0.10.0
libtpu: 0.0.40
codegen_flags: <defaults>
</compile_context>

<pallas_src>
import functools

import jax
import jax.numpy as jnp
from jax.experimental import pallas as pl
from jax.experimental.pallas import tpu as pltpu

LANE = 128   # vreg lane width
SUBLANE = 8  # vreg sublane depth (f32)


def _round_up(n, m):
    return ((n + m - 1) // m) * m


def _batch_tile(batch):
    """MXU/sublane-aligned batch tile. The cdiv grid masks the trailing
    partial block, so the tile never needs to divide the batch."""
    if batch < 2 * SUBLANE:
        return batch  # one tiny block (e.g. the B=8 demo)
    if batch <= 512:
        # >= 2 grid steps so both v7x TensorCores get work (harmless on
        # v5e/v6e), while keeping non-final blocks sublane(8)-aligned.
        return _round_up(pl.cdiv(batch, 2), SUBLANE)
    # Large batch: fixed 256-row tile = MXU row depth on v6e/v7x, 2x128 on
    # v5e. Double-buffered x (256x32 f32) + out (256x128 f32) is ~320 KiB:
    # trivial VMEM on every generation.
    return 256


def _make_fused_mlp_kernel(num_layers):
    """Fused [Linear -> ReLU]*(L-1) -> Linear.

    Ref order: x_ref, w_0, b_0, ..., w_{L-1}, b_{L-1}, o_ref.
    Intermediate activations stay in registers; only the (lane-padded)
    logits are stored.
    """

    def kernel(x_ref, *refs):
        o_ref = refs[-1]
        wb = refs[:-1]
        h = x_ref[...]
        for i in range(num_layers):
            w = wb[2 * i][...]
            b = wb[2 * i + 1][...]  # (1, out) -> broadcasts over batch rows
            # TODO(synk): optional bf16 cast of h/w here (MXU-native on
            # v6e/v7x, halves DMA) with f32 accumulation; kept in f32 to
            # preserve exact Q-network numerics.
            h = jnp.dot(h, w, preferred_element_type=jnp.float32) + b
            if i < num_layers - 1:
                h = jnp.maximum(h, 0.0)
        o_ref[...] = h.astype(o_ref.dtype)

    return kernel


def _fused_mlp(x, layer_params, out_padded, batch_tile):
    """One pallas_call over the whole MLP. All params are lane-padded at init."""
    B, in_features = x.shape
    num_layers = len(layer_params)
    grid = (pl.cdiv(B, batch_tile),)  # partial trailing block handled by Pallas

    in_specs = [pl.BlockSpec((batch_tile, in_features), lambda i: (i, 0))]
    flat_params = []
    flops = 0
    bytes_accessed = x.size * 4 + B * out_padded * 4
    for (w, b) in layer_params:
        fi, fo = w.shape
        # Constant block index -> each weight/bias is DMA'd to VMEM exactly
        # once and stays resident across all batch-grid steps.
        in_specs.append(pl.BlockSpec((fi, fo), lambda i: (0, 0)))
        in_specs.append(pl.BlockSpec((1, fo), lambda i: (0, 0)))
        flat_params += [w, b]
        flops += 2 * B * fi * fo  # actual (padded) MXU work performed
        bytes_accessed += (w.size + b.size) * 4

    # Lane-dense output slab -> unmasked vst; sliced back outside the kernel.
    # TODO(synk): at very large B the 32x padded writeback becomes the dominant
    # HBM stream -- benchmark a masked (tile, out_features) store there.
    out_specs = pl.BlockSpec((batch_tile, out_padded), lambda i: (i, 0))

    return pl.pallas_call(
        _make_fused_mlp_kernel(num_layers),
        out_shape=jax.ShapeDtypeStruct((B, out_padded), jnp.float32),
        grid=grid,
        in_specs=in_specs,
        out_specs=out_specs,
        compiler_params=pltpu.CompilerParams(
            dimension_semantics=("parallel",)),
        cost_estimate=pl.CostEstimate(
            flops=flops, transcendentals=0, bytes_accessed=bytes_accessed),
    )(x, *flat_params)


@functools.partial(jax.jit, static_argnames=("out_features",))
def qnetwork_forward(params, x, *, out_features):
    """Forward pass: ReLU on every hidden layer, linear output layer (logits).
    `params` are lane-padded at init; only a final column slice happens here."""
    out_padded = params[-1][0].shape[1]
    batch_tile = _batch_tile(x.shape[0])
    y_padded = _fused_mlp(x, params, out_padded, batch_tile)
    return y_padded[:, :out_features]


def init_qnetwork_params(key, input_size, output_size, hidden_layers):
    """Deterministic init mimicking PyTorch nn.Linear default
    (U[-1/sqrt(fan_in), 1/sqrt(fan_in)]). Weights stored as [in, out]
    (PyTorch weight transposed); biases as (1, out). Every layer width is
    zero-padded to a multiple of 128 lanes at init (exact: zero weight
    rows/cols, zero bias, ReLU(0)=0), so no per-call padding is needed.
    Returns (params, out_features)."""
    sizes = [input_size] + list(hidden_layers) + [output_size]
    params = []
    in_p = input_size  # x is fed unpadded (block last dim == full array dim)
    for fan_in, fan_out in zip(sizes[:-1], sizes[1:]):
        key, kw, kb = jax.random.split(key, 3)
        bound = 1.0 / (fan_in ** 0.5)
        w = jax.random.uniform(kw, (fan_in, fan_out), jnp.float32, -bound, bound)
        b = jax.random.uniform(kb, (1, fan_out), jnp.float32, -bound, bound)
        out_p = _round_up(fan_out, LANE)
        w_p = jnp.zeros((in_p, out_p), jnp.float32).at[:fan_in, :fan_out].set(w)
        b_p = jnp.zeros((1, out_p), jnp.float32).at[:, :fan_out].set(b)
        params.append((w_p, b_p))
        in_p = out_p
    return params, output_size


def qnetwork_forward_ref(params, x, out_features):
    """Pure-JAX reference on the same (padded) params, sliced to true width."""
    for w, b in params[:-1]:
        x = jnp.maximum(x @ w + b, 0.0)
    w, b = params[-1]
    return (x @ w + b)[:, :out_features]


if __name__ == "__main__":
    # QNetwork(input_size=32, output_size=4, hidden_layers=[64, 32]); batch of 8.
    input_size, output_size = 32, 4
    hidden_layers = [64, 32]
    batch = 8

    key = jax.random.PRNGKey(0)
    key, kx = jax.random.split(key)
    params, out_features = init_qnetwork_params(
        key, input_size, output_size, hidden_layers)
    x = jax.random.normal(kx, (batch, input_size), jnp.float32)

    out = qnetwork_forward(params, x, out_features=out_features)
    out = jax.block_until_ready(out)

    ref = qnetwork_forward_ref(params, x, out_features)
    assert out.shape == (batch, output_size)
    assert jnp.allclose(out, ref, atol=1e-5, rtol=1e-5)

    # Larger batch: exercises the cdiv grid (partial trailing block) and a
    # >= 2-step "parallel" batch grid (v7x megacore path).
    x2 = jax.random.normal(jax.random.PRNGKey(1), (100, input_size), jnp.float32)
    out2 = jax.block_until_ready(
        qnetwork_forward(params, x2, out_features=out_features))
    ref2 = qnetwork_forward_ref(params, x2, out_features)
    assert out2.shape == (100, output_size)
    assert jnp.allclose(out2, ref2, atol=1e-5, rtol=1e-5)

    print("KERNEL_OK")
</pallas_src>

<mosaic_0001>
module attributes {stable_mosaic.version = 11 : i64} {
  func.func @kernel(%arg0: i32, %arg1: memref<8x32xf32, #tpu.memory_space<vmem>>, %arg2: memref<32x128xf32, #tpu.memory_space<vmem>>, %arg3: memref<1x128xf32, #tpu.memory_space<vmem>>, %arg4: memref<128x128xf32, #tpu.memory_space<vmem>>, %arg5: memref<1x128xf32, #tpu.memory_space<vmem>>, %arg6: memref<128x128xf32, #tpu.memory_space<vmem>>, %arg7: memref<1x128xf32, #tpu.memory_space<vmem>>, %arg8: memref<8x128xf32, #tpu.memory_space<vmem>>) attributes {dimension_semantics = [#tpu.dimension_semantics<parallel>], iteration_bounds = array<i64: 1>, scalar_prefetch = 0 : i64, scratch_operands = 0 : i64, tpu.core_type = #tpu.core_type<tc>, window_params = [{transform_indices = @transform_0, window_bounds = array<i64: 8, 32>}, {pipeline_mode = #tpu.pipeline_mode<synchronous>, transform_indices = @transform_1, window_bounds = array<i64: 32, 128>}, {pipeline_mode = #tpu.pipeline_mode<synchronous>, transform_indices = @transform_2, window_bounds = array<i64: 1, 128>}, {pipeline_mode = #tpu.pipeline_mode<synchronous>, transform_indices = @transform_3, window_bounds = array<i64: 128, 128>}, {pipeline_mode = #tpu.pipeline_mode<synchronous>, transform_indices = @transform_4, window_bounds = array<i64: 1, 128>}, {pipeline_mode = #tpu.pipeline_mode<synchronous>, transform_indices = @transform_5, window_bounds = array<i64: 128, 128>}, {pipeline_mode = #tpu.pipeline_mode<synchronous>, transform_indices = @transform_6, window_bounds = array<i64: 1, 128>}, {transform_indices = @transform_7, window_bounds = array<i64: 8, 128>}]} {
    %c0 = arith.constant 0 : index
    %c0_0 = arith.constant 0 : index
    %0 = vector.load %arg1[%c0, %c0_0] : memref<8x32xf32, #tpu.memory_space<vmem>>, vector<8x32xf32>
    %c0_1 = arith.constant 0 : index
    %c0_2 = arith.constant 0 : index
    %1 = vector.load %arg2[%c0_1, %c0_2] : memref<32x128xf32, #tpu.memory_space<vmem>>, vector<32x128xf32>
    %c0_3 = arith.constant 0 : index
    %c0_4 = arith.constant 0 : index
    %2 = vector.load %arg3[%c0_3, %c0_4] : memref<1x128xf32, #tpu.memory_space<vmem>>, vector<1x128xf32>
    %cst = arith.constant dense<0.000000e+00> : vector<8x128xf32>
    %3 = tpu.matmul %0, %1, %cst {dimension_numbers = #tpu.dot_dimension_numbers<[1], [0], [0], [1], [0, 0, 1, 1], [], []>} : vector<8x32xf32>, vector<32x128xf32>, vector<8x128xf32> -> vector<8x128xf32>
    %4 = vector.broadcast %2 : vector<1x128xf32> to vector<8x128xf32>
    %5 = arith.addf %3, %4 : vector<8x128xf32>
    %cst_5 = arith.constant 0.000000e+00 : f32
    %6 = vector.broadcast %cst_5 : f32 to vector<8x128xf32>
    %7 = arith.maximumf %5, %6 : vector<8x128xf32>
    %c0_6 = arith.constant 0 : index
    %c0_7 = arith.constant 0 : index
    %8 = vector.load %arg4[%c0_6, %c0_7] : memref<128x128xf32, #tpu.memory_space<vmem>>, vector<128x128xf32>
    %c0_8 = arith.constant 0 : index
    %c0_9 = arith.constant 0 : index
    %9 = vector.load %arg5[%c0_8, %c0_9] : memref<1x128xf32, #tpu.memory_space<vmem>>, vector<1x128xf32>
    %cst_10 = arith.constant dense<0.000000e+00> : vector<8x128xf32>
    %10 = tpu.matmul %7, %8, %cst_10 {dimension_numbers = #tpu.dot_dimension_numbers<[1], [0], [0], [1], [0, 0, 1, 1], [], []>} : vector<8x128xf32>, vector<128x128xf32>, vector<8x128xf32> -> vector<8x128xf32>
    %11 = vector.broadcast %9 : vector<1x128xf32> to vector<8x128xf32>
    %12 = arith.addf %10, %11 : vector<8x128xf32>
    %cst_11 = arith.constant 0.000000e+00 : f32
    %13 = vector.broadcast %cst_11 : f32 to vector<8x128xf32>
    %14 = arith.maximumf %12, %13 : vector<8x128xf32>
    %c0_12 = arith.constant 0 : index
    %c0_13 = arith.constant 0 : index
    %15 = vector.load %arg6[%c0_12, %c0_13] : memref<128x128xf32, #tpu.memory_space<vmem>>, vector<128x128xf32>
    %c0_14 = arith.constant 0 : index
    %c0_15 = arith.constant 0 : index
    %16 = vector.load %arg7[%c0_14, %c0_15] : memref<1x128xf32, #tpu.memory_space<vmem>>, vector<1x128xf32>
    %cst_16 = arith.constant dense<0.000000e+00> : vector<8x128xf32>
    %17 = tpu.matmul %14, %15, %cst_16 {dimension_numbers = #tpu.dot_dimension_numbers<[1], [0], [0], [1], [0, 0, 1, 1], [], []>} : vector<8x128xf32>, vector<128x128xf32>, vector<8x128xf32> -> vector<8x128xf32>
    %18 = vector.broadcast %16 : vector<1x128xf32> to vector<8x128xf32>
    %19 = arith.addf %17, %18 : vector<8x128xf32>
    %c0_17 = arith.constant 0 : index
    %c0_18 = arith.constant 0 : index
    %20 = vector.load %arg8[%c0_17, %c0_18] : memref<8x128xf32, #tpu.memory_space<vmem>>, vector<8x128xf32>
    tpu.vector_store %arg8[%c0_17, %c0_18], %19 {strides = array<i32>} : memref<8x128xf32, #tpu.memory_space<vmem>>, vector<8x128xf32>,
    return
  }
  func.func @transform_0(%arg0: i32) -> (i32, i32) {
    %c0_i32 = arith.constant 0 : i32
    %c0_i32_0 = arith.constant 0 : i32
    return %arg0, %c0_i32 : i32, i32
  }
  func.func @transform_1(%arg0: i32) -> (i32, i32) {
    %c0_i32 = arith.constant 0 : i32
    %c0_i32_0 = arith.constant 0 : i32
    %c0_i32_1 = arith.constant 0 : i32
    return %c0_i32, %c0_i32_0 : i32, i32
  }
  func.func @transform_2(%arg0: i32) -> (i32, i32) {
    %c0_i32 = arith.constant 0 : i32
    %c0_i32_0 = arith.constant 0 : i32
    %c0_i32_1 = arith.constant 0 : i32
    return %c0_i32, %c0_i32_0 : i32, i32
  }
  func.func @transform_3(%arg0: i32) -> (i32, i32) {
    %c0_i32 = arith.constant 0 : i32
    %c0_i32_0 = arith.constant 0 : i32
    %c0_i32_1 = arith.constant 0 : i32
    return %c0_i32, %c0_i32_0 : i32, i32
  }
  func.func @transform_4(%arg0: i32) -> (i32, i32) {
    %c0_i32 = arith.constant 0 : i32
    %c0_i32_0 = arith.constant 0 : i32
    %c0_i32_1 = arith.constant 0 : i32
    return %c0_i32, %c0_i32_0 : i32, i32
  }
  func.func @transform_5(%arg0: i32) -> (i32, i32) {
    %c0_i32 = arith.constant 0 : i32
    %c0_i32_0 = arith.constant 0 : i32
    %c0_i32_1 = arith.constant 0 : i32
    return %c0_i32, %c0_i32_0 : i32, i32
  }
  func.func @transform_6(%arg0: i32) -> (i32, i32) {
    %c0_i32 = arith.constant 0 : i32
    %c0_i32_0 = arith.constant 0 : i32
    %c0_i32_1 = arith.constant 0 : i32
    return %c0_i32, %c0_i32_0 : i32, i32
  }
  func.func @transform_7(%arg0: i32) -> (i32, i32) {
    %c0_i32 = arith.constant 0 : i32
    %c0_i32_0 = arith.constant 0 : i32
    return %arg0, %c0_i32 : i32, i32
  }
}

</mosaic_0001>

<llo_original>
// kernel: qnetwork_forward.1
$region0: #{qnetwork_forward.1}
  #allocation0 [shape = 'u32[]', space=smem, size = 0x4, offset = 0x4, fixed_abs, tag = 'smem constant byte address 0x4 - core index']
  #allocation1 [shape = 'u32[144,128]{1,0:T(1,128)}', space=vmem, size = 0x12000, scoped, tag = 'internal scratch']
  %s0 = inlined_call_operand.vmem [shape: f32[8,32], index: 0, kind: input, shape index: {}]
  %s1 = inlined_call_operand.hbm [shape: f32[32,128], index: 1, kind: input, shape index: {}]
  %s2 = inlined_call_operand.vmem [shape: f32[1,128], index: 2, kind: input, shape index: {}]
  %s3 = inlined_call_operand.hbm [shape: f32[128,128], index: 3, kind: input, shape index: {}]
  %s4 = inlined_call_operand.vmem [shape: f32[1,128], index: 4, kind: input, shape index: {}]
  %s5 = inlined_call_operand.hbm [shape: f32[128,128], index: 5, kind: input, shape index: {}]
  %s6 = inlined_call_operand.vmem [shape: f32[1,128], index: 6, kind: input, shape index: {}]
  %s7 = inlined_call_operand.vmem [shape: f32[8,128], index: 7, kind: output, shape index: {}]
  %s8 = sld [smem:[#allocation0]]
  $region50: #{qnetwork_forward.1} parent=0
    _
  %s10 = ssub.s32 1, %s8
  %s11 = scalar_select 0, %s10, %s8
  $region1: #{qnetwork_forward.1} parent=0
    #allocation2 [shape = 'u8[16384]{0}', space=vmem, size = 0x4000, scoped, tag = 'input window, operand 1, single buffered']
    #allocation3 [shape = 's32[1]{0}', space=sflag, size = 0x4, scoped, tag = 'scoped memory for qnetwork_forward.1']
    #allocation4 [shape = 'u8[65536]{0}', space=vmem, size = 0x10000, scoped, tag = 'input window, operand 3, single buffered']
    #allocation5 [shape = 's32[1]{0}', space=sflag, size = 0x4, scoped, tag = 'scoped memory for qnetwork_forward.1']
    #allocation6 [shape = 'u8[65536]{0}', space=vmem, size = 0x10000, scoped, tag = 'input window, operand 5, single buffered']
    %12 = vsyncpa [#allocation3], 0
    %13 = vsyncpa [#allocation5], 0
    // Predicated region
    $region2: #{qnetwork_forward.1} parent=1 // pred_check
      _
    $region3: #{qnetwork_forward.1} parent=1 // pred_check_branch
      %15 = sbr.rel (0) target = $region5
    $region4: #{qnetwork_forward.1} parent=1 // pred_region
      _
    $region5: #{qnetwork_forward.1} parent=1 // pred_fallthru
      _
    // Predicated region
    $region6: #{qnetwork_forward.1} parent=1 // pred_check
      _
    $region7: #{qnetwork_forward.1} parent=1 // pred_check_branch
      %17 = sbr.rel (0) target = $region9
    $region8: #{qnetwork_forward.1} parent=1 // pred_region
      %s19 = ssub.s32 512, 512
      %20 = vsyncadd [#allocation3], %s19
      %s21 = sshll.u32 [#allocation2], 4
      %s22 = int_to_ptr.vmem [resolvable:$true] %s21
      %27 = dma.hbm_to_vmem [thread:$0]  %s1, 512, %s22, [#allocation3], 128, 128, 8
    $region9: #{qnetwork_forward.1} parent=1 // pred_fallthru
      _
    // Predicated region
    $region10: #{qnetwork_forward.1} parent=1 // pred_check
      _
    $region11: #{qnetwork_forward.1} parent=1 // pred_check_branch
      %29 = sbr.rel (0) target = $region13
    $region12: #{qnetwork_forward.1} parent=1 // pred_region
      _
    $region13: #{qnetwork_forward.1} parent=1 // pred_fallthru
      _
    // Predicated region
    $region14: #{qnetwork_forward.1} parent=1 // pred_check
      _
    $region15: #{qnetwork_forward.1} parent=1 // pred_check_branch
      %31 = sbr.rel (0) target = $region17
    $region16: #{qnetwork_forward.1} parent=1 // pred_region
      %s33 = ssub.s32 2048, 2048
      %34 = vsyncadd [#allocation5], %s33
      %s35 = sshll.u32 [#allocation4], 4
      %s36 = int_to_ptr.vmem [resolvable:$true] %s35
      %41 = dma.hbm_to_vmem [thread:$0]  %s3, 2048, %s36, [#allocation5], 128, 128, 8
    $region17: #{qnetwork_forward.1} parent=1 // pred_fallthru
      _
    // Predicated region
    $region18: #{qnetwork_forward.1} parent=1 // pred_check
      _
    $region19: #{qnetwork_forward.1} parent=1 // pred_check_branch
      %43 = sbr.rel (0) target = $region21
    $region20: #{qnetwork_forward.1} parent=1 // pred_region
      _
    $region21: #{qnetwork_forward.1} parent=1 // pred_fallthru
      _
    // Predicated region
    $region22: #{qnetwork_forward.1} parent=1 // pred_check
      _
    $region23: #{qnetwork_forward.1} parent=1 // pred_check_branch
      %45 = sbr.rel (0) target = $region25
    $region24: #{qnetwork_forward.1} parent=1 // pred_region
      %s47 = ssub.s32 2048, 2048
      %48 = vsyncadd [#allocation5], %s47
      %s49 = sshll.u32 [#allocation6], 4
      %s50 = int_to_ptr.vmem [resolvable:$true] %s49
      %55 = dma.hbm_to_vmem [thread:$0]  %s5, 2048, %s50, [#allocation5], 128, 128, 8
    $region25: #{qnetwork_forward.1} parent=1 // pred_fallthru
      _
    // Predicated region
    $region26: #{qnetwork_forward.1} parent=1 // pred_check
      _
    $region27: #{qnetwork_forward.1} parent=1 // pred_check_branch
      %57 = sbr.rel (0) target = $region29
    $region28: #{qnetwork_forward.1} parent=1 // pred_region
      _
    $region29: #{qnetwork_forward.1} parent=1 // pred_fallthru
      _
    // Predicated region
    $region30: #{qnetwork_forward.1} parent=1 // pred_check
      _
    $region31: #{qnetwork_forward.1} parent=1 // pred_check_branch
      %59 = sbr.rel (0) target = $region33
    $region32: #{qnetwork_forward.1} parent=1 // pred_region
      %60 = dma.done [#allocation3], 512
    $region33: #{qnetwork_forward.1} parent=1 // pred_fallthru
      _
    // Predicated region
    $region34: #{qnetwork_forward.1} parent=1 // pred_check
      _
    $region35: #{qnetwork_forward.1} parent=1 // pred_check_branch
      %62 = sbr.rel (0) target = $region37
    $region36: #{qnetwork_forward.1} parent=1 // pred_region
      %63 = dma.done [#allocation5], 2048
    $region37: #{qnetwork_forward.1} parent=1 // pred_fallthru
      _
    // Predicated region
    $region38: #{qnetwork_forward.1} parent=1 // pred_check
      _
    $region39: #{qnetwork_forward.1} parent=1 // pred_check_branch
      %65 = sbr.rel (0) target = $region41
    $region40: #{qnetwork_forward.1} parent=1 // pred_region
      %66 = dma.done [#allocation5], 2048
    $region41: #{qnetwork_forward.1} parent=1 // pred_fallthru
      _
    %v67 = vld [vmem:[%s0] sm:$0xff]
    %v68 = vld [vmem:[#allocation2] sm:$0xff]
    %v69 = vld [vmem:[#allocation2 + $0x8] sm:$0xff]
    %v70 = vld [vmem:[#allocation2 + $0x10] sm:$0xff]
    %v71 = vld [vmem:[#allocation2 + $0x18] sm:$0xff]
    %v72 = vld [vmem:[%s2] sm:$0x1]
    %v74 = vlaneseq
    %v75 = vshrl.u32 %v74, 7
    %v76 = vsub.s32 0, %v75
    %v77 = vrot.slane %v72, %v76
    %vm79 = vcmask 261120
    %v81 = vsel %vm79, %v67, 0
    %83 = vmatprep.subr.mxu0 0.0
    %84 = vmatpush1.msra.mxu0 %v68
    %85 = vmatprep.subr.mxu0 0.0
    %86 = vmatpush1.msra.mxu0 %v69
    %87 = vmatprep.subr.mxu0 0.0
    %88 = vmatpush1.msra.mxu0 %v70
    %89 = vmatprep.subr.mxu0 0.0
    %90 = vmatpush1.msra.mxu0 %v71
    %91 = vmatprep.subr.mxu0 0.0
    %92 = vmatpush1.msra.mxu0 0.0
    %93 = vmatprep.subr.mxu0 0.0
    %94 = vmatpush1.msra.mxu0 0.0
    %95 = vmatprep.subr.mxu0 0.0
    %96 = vmatpush1.msra.mxu0 0.0
    %97 = vmatprep.subr.mxu0 0.0
    %98 = vmatpush1.msra.mxu0 0.0
    %99 = vmatprep.subr.mxu0 0.0
    %100 = vmatpush1.msra.mxu0 0.0
    %101 = vmatprep.subr.mxu0 0.0
    %102 = vmatpush1.msra.mxu0 0.0
    %103 = vmatprep.subr.mxu0 0.0
    %104 = vmatpush1.msra.mxu0 0.0
    %105 = vmatprep.subr.mxu0 0.0
    %106 = vmatpush1.msra.mxu0 0.0
    %107 = vmatprep.subr.mxu0 0.0
    %108 = vmatpush1.msra.mxu0 0.0
    %109 = vmatprep.subr.mxu0 0.0
    %110 = vmatpush1.msra.mxu0 0.0
    %111 = vmatprep.subr.mxu0 0.0
    %112 = vmatpush1.msra.mxu0 0.0
    %113 = vmatprep.subr.mxu0 0.0
    %114 = vmatpush1.msra.mxu0 0.0
    %115 = vmatprep.subr.mxu0 0.0
    %116 = vmatpush1.msra.mxu0 0.0
    %117 = vmatprep.subr.mxu0 0.0
    %118 = vmatpush1.msra.mxu0 0.0
    %119 = vmatprep.subr.mxu0 0.0
    %120 = vmatpush1.msra.mxu0 0.0
    %121 = vmatprep.subr.mxu0 0.0
    %122 = vmatpush1.msra.mxu0 0.0
    %123 = vmatprep.subr.mxu0 0.0
    %124 = vmatpush1.msra.mxu0 0.0
    %125 = vmatprep.subr.mxu0 0.0
    %126 = vmatpush1.msra.mxu0 0.0
    %127 = vmatprep.subr.mxu0 0.0
    %128 = vmatpush1.msra.mxu0 0.0
    %129 = vmatprep.subr.mxu0 0.0
    %130 = vmatpush1.msra.mxu0 0.0
    %131 = vmatprep.subr.mxu0 0.0
    %132 = vmatpush1.msra.mxu0 0.0
    %133 = vmatprep.subr.mxu0 0.0
    %134 = vmatpush1.msra.mxu0 0.0
    %135 = vmatprep.subr.mxu0 0.0
    %136 = vmatpush1.msra.mxu0 0.0
    %137 = vmatprep.subr.mxu0 0.0
    %138 = vmatpush1.msra.mxu0 0.0
    %139 = vmatprep.subr.mxu0 0.0
    %140 = vmatpush1.msra.mxu0 0.0
    %141 = vmatprep.subr.mxu0 0.0
    %142 = vmatpush1.msra.mxu0 0.0
    %143 = vmatprep.subr.mxu0 0.0
    %144 = vmatpush1.msra.mxu0 0.0
    %145 = vmatprep.subr.mxu0 0.0
    %146 = vmatpush1.msra.mxu0 0.0
    %147 = vmatprep.mubr.f32.mxu0 0.0
    %148 = vmatmul.mubr.f32.gmra.mrb[0].mxu0 %v81
    %v149 = vpop.f32.mrb[0].mxu0
    %v150 = vadd.f32 %v77, %v149
    %v151 = vpop.f32.mrb[0].mxu0
    %152 = vdwg.mxu0
    %v153 = vmax.f32 %v150, 0.0
    %v154 = vld [vmem:[#allocation4] sm:$0xff]
    %v155 = vld [vmem:[#allocation4 + $0x8] sm:$0xff]
    %v156 = vld [vmem:[#allocation4 + $0x10] sm:$0xff]
    %v157 = vld [vmem:[#allocation4 + $0x18] sm:$0xff]
    %v158 = vld [vmem:[#allocation4 + $0x20] sm:$0xff]
    %v159 = vld [vmem:[#allocation4 + $0x28] sm:$0xff]
    %v160 = vld [vmem:[#allocation4 + $0x30] sm:$0xff]
    %v161 = vld [vmem:[#allocation4 + $0x38] sm:$0xff]
    %v162 = vld [vmem:[#allocation4 + $0x40] sm:$0xff]
    %v163 = vld [vmem:[#allocation4 + $0x48] sm:$0xff]
    %v164 = vld [vmem:[#allocation4 + $0x50] sm:$0xff]
    %v165 = vld [vmem:[#allocation4 + $0x58] sm:$0xff]
    %v166 = vld [vmem:[#allocation4 + $0x60] sm:$0xff]
    %v167 = vld [vmem:[#allocation4 + $0x68] sm:$0xff]
    %v168 = vld [vmem:[#allocation4 + $0x70] sm:$0xff]
    %v169 = vld [vmem:[#allocation4 + $0x78] sm:$0xff]
    %v170 = vld [vmem:[%s4] sm:$0x1]
    %v172 = vlaneseq
    %v173 = vshrl.u32 %v172, 7
    %v174 = vsub.s32 0, %v173
    %v175 = vrot.slane %v170, %v174
    %177 = vmatprep.subr.mxu0 0.0
    %178 = vmatpush1.msra.mxu0 %v154
    %179 = vmatprep.subr.mxu0 0.0
    %180 = vmatpush1.msra.mxu0 %v155
    %181 = vmatprep.subr.mxu0 0.0
    %182 = vmatpush1.msra.mxu0 %v156
    %183 = vmatprep.subr.mxu0 0.0
    %184 = vmatpush1.msra.mxu0 %v157
    %185 = vmatprep.subr.mxu0 0.0
    %186 = vmatpush1.msra.mxu0 %v158
    %187 = vmatprep.subr.mxu0 0.0
    %188 = vmatpush1.msra.mxu0 %v159
    %189 = vmatprep.subr.mxu0 0.0
    %190 = vmatpush1.msra.mxu0 %v160
    %191 = vmatprep.subr.mxu0 0.0
    %192 = vmatpush1.msra.mxu0 %v161
    %193 = vmatprep.subr.mxu0 0.0
    %194 = vmatpush1.msra.mxu0 %v162
    %195 = vmatprep.subr.mxu0 0.0
    %196 = vmatpush1.msra.mxu0 %v163
    %197 = vmatprep.subr.mxu0 0.0
    %198 = vmatpush1.msra.mxu0 %v164
    %199 = vmatprep.subr.mxu0 0.0
    %200 = vmatpush1.msra.mxu0 %v165
    %201 = vmatprep.subr.mxu0 0.0
    %202 = vmatpush1.msra.mxu0 %v166
    %203 = vmatprep.subr.mxu0 0.0
    %204 = vmatpush1.msra.mxu0 %v167
    %205 = vmatprep.subr.mxu0 0.0
    %206 = vmatpush1.msra.mxu0 %v168
    %207 = vmatprep.subr.mxu0 0.0
    %208 = vmatpush1.msra.mxu0 %v169
    %209 = vmatprep.subr.mxu0 0.0
    %210 = vmatpush1.msra.mxu0 0.0
    %211 = vmatprep.subr.mxu0 0.0
    %212 = vmatpush1.msra.mxu0 0.0
    %213 = vmatprep.subr.mxu0 0.0
    %214 = vmatpush1.msra.mxu0 0.0
    %215 = vmatprep.subr.mxu0 0.0
    %216 = vmatpush1.msra.mxu0 0.0
    %217 = vmatprep.subr.mxu0 0.0
    %218 = vmatpush1.msra.mxu0 0.0
    %219 = vmatprep.subr.mxu0 0.0
    %220 = vmatpush1.msra.mxu0 0.0
    %221 = vmatprep.subr.mxu0 0.0
    %222 = vmatpush1.msra.mxu0 0.0
    %223 = vmatprep.subr.mxu0 0.0
    %224 = vmatpush1.msra.mxu0 0.0
    %225 = vmatprep.subr.mxu0 0.0
    %226 = vmatpush1.msra.mxu0 0.0
    %227 = vmatprep.subr.mxu0 0.0
    %228 = vmatpush1.msra.mxu0 0.0
    %229 = vmatprep.subr.mxu0 0.0
    %230 = vmatpush1.msra.mxu0 0.0
    %231 = vmatprep.subr.mxu0 0.0
    %232 = vmatpush1.msra.mxu0 0.0
    %233 = vmatprep.subr.mxu0 0.0
    %234 = vmatpush1.msra.mxu0 0.0
    %235 = vmatprep.subr.mxu0 0.0
    %236 = vmatpush1.msra.mxu0 0.0
    %237 = vmatprep.subr.mxu0 0.0
    %238 = vmatpush1.msra.mxu0 0.0
    %239 = vmatprep.subr.mxu0 0.0
    %240 = vmatpush1.msra.mxu0 0.0
    %241 = vmatprep.mubr.f32.mxu0 0.0
    %242 = vmatmul.mubr.f32.gmra.mrb[0].mxu0 %v153
    %v243 = vpop.f32.mrb[0].mxu0
    %v244 = vadd.f32 %v175, %v243
    %v245 = vpop.f32.mrb[0].mxu0
    %246 = vdwg.mxu0
    %v247 = vmax.f32 %v244, 0.0
    %v248 = vld [vmem:[#allocation6] sm:$0xff]
    %v249 = vld [vmem:[#allocation6 + $0x8] sm:$0xff]
    %v250 = vld [vmem:[#allocation6 + $0x10] sm:$0xff]
    %v251 = vld [vmem:[#allocation6 + $0x18] sm:$0xff]
    %v252 = vld [vmem:[#allocation6 + $0x20] sm:$0xff]
    %v253 = vld [vmem:[#allocation6 + $0x28] sm:$0xff]
    %v254 = vld [vmem:[#allocation6 + $0x30] sm:$0xff]
    %v255 = vld [vmem:[#allocation6 + $0x38] sm:$0xff]
    %v256 = vld [vmem:[#allocation6 + $0x40] sm:$0xff]
    %v257 = vld [vmem:[#allocation6 + $0x48] sm:$0xff]
    %v258 = vld [vmem:[#allocation6 + $0x50] sm:$0xff]
    %v259 = vld [vmem:[#allocation6 + $0x58] sm:$0xff]
    %v260 = vld [vmem:[#allocation6 + $0x60] sm:$0xff]
    %v261 = vld [vmem:[#allocation6 + $0x68] sm:$0xff]
    %v262 = vld [vmem:[#allocation6 + $0x70] sm:$0xff]
    %v263 = vld [vmem:[#allocation6 + $0x78] sm:$0xff]
    %v264 = vld [vmem:[%s6] sm:$0x1]
    %v266 = vlaneseq
    %v267 = vshrl.u32 %v266, 7
    %v268 = vsub.s32 0, %v267
    %v269 = vrot.slane %v264, %v268
    %271 = vmatprep.subr.mxu0 0.0
    %272 = vmatpush1.msra.mxu0 %v248
    %273 = vmatprep.subr.mxu0 0.0
    %274 = vmatpush1.msra.mxu0 %v249
    %275 = vmatprep.subr.mxu0 0.0
    %276 = vmatpush1.msra.mxu0 %v250
    %277 = vmatprep.subr.mxu0 0.0
    %278 = vmatpush1.msra.mxu0 %v251
    %279 = vmatprep.subr.mxu0 0.0
    %280 = vmatpush1.msra.mxu0 %v252
    %281 = vmatprep.subr.mxu0 0.0
    %282 = vmatpush1.msra.mxu0 %v253
    %283 = vmatprep.subr.mxu0 0.0
    %284 = vmatpush1.msra.mxu0 %v254
    %285 = vmatprep.subr.mxu0 0.0
    %286 = vmatpush1.msra.mxu0 %v255
    %287 = vmatprep.subr.mxu0 0.0
    %288 = vmatpush1.msra.mxu0 %v256
    %289 = vmatprep.subr.mxu0 0.0
    %290 = vmatpush1.msra.mxu0 %v257
    %291 = vmatprep.subr.mxu0 0.0
    %292 = vmatpush1.msra.mxu0 %v258
    %293 = vmatprep.subr.mxu0 0.0
    %294 = vmatpush1.msra.mxu0 %v259
    %295 = vmatprep.subr.mxu0 0.0
    %296 = vmatpush1.msra.mxu0 %v260
    %297 = vmatprep.subr.mxu0 0.0
    %298 = vmatpush1.msra.mxu0 %v261
    %299 = vmatprep.subr.mxu0 0.0
    %300 = vmatpush1.msra.mxu0 %v262
    %301 = vmatprep.subr.mxu0 0.0
    %302 = vmatpush1.msra.mxu0 %v263
    %303 = vmatprep.subr.mxu0 0.0
    %304 = vmatpush1.msra.mxu0 0.0
    %305 = vmatprep.subr.mxu0 0.0
    %306 = vmatpush1.msra.mxu0 0.0
    %307 = vmatprep.subr.mxu0 0.0
    %308 = vmatpush1.msra.mxu0 0.0
    %309 = vmatprep.subr.mxu0 0.0
    %310 = vmatpush1.msra.mxu0 0.0
    %311 = vmatprep.subr.mxu0 0.0
    %312 = vmatpush1.msra.mxu0 0.0
    %313 = vmatprep.subr.mxu0 0.0
    %314 = vmatpush1.msra.mxu0 0.0
    %315 = vmatprep.subr.mxu0 0.0
    %316 = vmatpush1.msra.mxu0 0.0
    %317 = vmatprep.subr.mxu0 0.0
    %318 = vmatpush1.msra.mxu0 0.0
    %319 = vmatprep.subr.mxu0 0.0
    %320 = vmatpush1.msra.mxu0 0.0
    %321 = vmatprep.subr.mxu0 0.0
    %322 = vmatpush1.msra.mxu0 0.0
    %323 = vmatprep.subr.mxu0 0.0
    %324 = vmatpush1.msra.mxu0 0.0
    %325 = vmatprep.subr.mxu0 0.0
    %326 = vmatpush1.msra.mxu0 0.0
    %327 = vmatprep.subr.mxu0 0.0
    %328 = vmatpush1.msra.mxu0 0.0
    %329 = vmatprep.subr.mxu0 0.0
    %330 = vmatpush1.msra.mxu0 0.0
    %331 = vmatprep.subr.mxu0 0.0
    %332 = vmatpush1.msra.mxu0 0.0
    %333 = vmatprep.subr.mxu0 0.0
    %334 = vmatpush1.msra.mxu0 0.0
    %335 = vmatprep.mubr.f32.mxu0 0.0
    %336 = vmatmul.mubr.f32.gmra.mrb[0].mxu0 %v247
    %v337 = vpop.f32.mrb[0].mxu0
    %v338 = vadd.f32 %v269, %v337
    %v339 = vpop.f32.mrb[0].mxu0
    %340 = vdwg.mxu0
    %341 = vst [vmem:[%s7] sm:$0xff] %v338
    // Predicated region
    $region42: #{qnetwork_forward.1} parent=1 // pred_check
      _
    $region43: #{qnetwork_forward.1} parent=1 // pred_check_branch
      %343 = sbr.rel (0) target = $region45
    $region44: #{qnetwork_forward.1} parent=1 // pred_region
      _
    $region45: #{qnetwork_forward.1} parent=1 // pred_fallthru
      _
    // Predicated region
    $region46: #{qnetwork_forward.1} parent=1 // pred_check
      _
    $region47: #{qnetwork_forward.1} parent=1 // pred_check_branch
      %345 = sbr.rel (0) target = $region49
    $region48: #{qnetwork_forward.1} parent=1 // pred_region
      _
    $region49: #{qnetwork_forward.1} parent=1 // pred_fallthru
      _
    %346 = vsyncpa [#allocation3], 1
    %347 = vsyncpa [#allocation5], 1

</llo_original>
